<compile_context>
chip_gen: v6e
topology: v6e:2x2x1
jax: 0.10.0
libtpu: 0.0.40
codegen_flags: <defaults>
</compile_context>

<pallas_src>
import jax
import jax.numpy as jnp
from jax.experimental import pallas as pl
from jax.experimental.pallas import tpu as pltpu

NUM_STATES = 56
NUM_ACTIONS = 50
NUM_DESIRED_TORQUES = 50
HIDDEN_SIZES = (256, 256, 256)
IN_PADDED = 128           # lane-dense packed (state|action|zeros) input width
OUT_PADDED = 128          # lane-dense output width (multiple of 128)
MAX_BATCH_TILE = 1024     # step-overhead amortization; ~5 MB working set


def _round_up(x, m):
    return (x + m - 1) // m * m


def spd_mlp_kernel(x_ref,
                   w1_ref, b1_ref,
                   w2_ref, b2_ref,
                   w3_ref, b3_ref,
                   w4_ref, b4_ref,
                   o_ref):
    # Layer 1: packed (TB,128) bf16 input @ fused (128,H1) bf16 weight.
    h = jnp.dot(x_ref[...], w1_ref[...],
                preferred_element_type=jnp.float32) + b1_ref[...]
    h = jnp.maximum(h, 0.2 * h)                       # leaky-ReLU(0.2), f32 VPU
    h = jnp.dot(h.astype(jnp.bfloat16), w2_ref[...],
                preferred_element_type=jnp.float32) + b2_ref[...]
    h = jnp.maximum(h, 0.2 * h)
    h = jnp.dot(h.astype(jnp.bfloat16), w3_ref[...],
                preferred_element_type=jnp.float32) + b3_ref[...]
    h = jnp.maximum(h, 0.2 * h)
    # std already folded into w4/b4; output padded to 128 lanes (zeros > 50).
    o_ref[...] = (jnp.dot(h.astype(jnp.bfloat16), w4_ref[...],
                          preferred_element_type=jnp.float32) + b4_ref[...])


def init_params(key):
    """Xavier-uniform weights, zero biases (matches weights_init); std = 100."""
    sizes = [NUM_STATES + NUM_ACTIONS, *HIDDEN_SIZES, NUM_DESIRED_TORQUES]
    params = []
    for i in range(len(sizes) - 1):
        fan_in, fan_out = sizes[i], sizes[i + 1]
        key, sub = jax.random.split(key)
        limit = (6.0 / (fan_in + fan_out)) ** 0.5
        w = jax.random.uniform(sub, (fan_in, fan_out), jnp.float32, -limit, limit)
        b = jnp.zeros((1, fan_out), jnp.float32)
        params.append((w, b))
    std = jnp.ones((1, NUM_DESIRED_TORQUES), jnp.float32) * 100.0
    return params, std


def prepare_params(params, std):
    """Fuse/zero-pad W1 to (128,H1), fold std into the last layer, pad the last
    layer's output to 128 lanes, cast all matmul weights to bf16."""
    (w1, b1), (w2, b2), (w3, b3), (w4, b4) = params
    # Fused layer-1 weight: rows 0:56 state, 56:106 action, 106:128 zero.
    w1p = jnp.zeros((IN_PADDED, w1.shape[1]), jnp.float32)
    w1p = w1p.at[:NUM_STATES + NUM_ACTIONS].set(w1)
    # Fold std into the last layer and pad its output to 128 lanes.
    w4f = w4 * std
    b4f = b4 * std
    w4p = jnp.zeros((w4.shape[0], OUT_PADDED), jnp.float32)
    w4p = w4p.at[:, :NUM_DESIRED_TORQUES].set(w4f)
    b4p = jnp.zeros((1, OUT_PADDED), jnp.float32)
    b4p = b4p.at[:, :NUM_DESIRED_TORQUES].set(b4f)
    return ((w1p.astype(jnp.bfloat16), b1.astype(jnp.float32)),
            (w2.astype(jnp.bfloat16), b2.astype(jnp.float32)),
            (w3.astype(jnp.bfloat16), b3.astype(jnp.float32)),
            (w4p.astype(jnp.bfloat16), b4p.astype(jnp.float32)))


def _pack_inputs(state, action, Bp):
    """Host-side fused concat + zero-pad to 128 lanes + bf16 cast."""
    B = state.shape[0]
    x = jnp.zeros((Bp, IN_PADDED), jnp.float32)
    x = x.at[:B, :NUM_STATES].set(state.astype(jnp.float32))
    x = x.at[:B, NUM_STATES:NUM_STATES + NUM_ACTIONS].set(
        action.astype(jnp.float32))
    return x.astype(jnp.bfloat16)


def _choose_batch_tile(B):
    """Batch tile: multiple of 16 (bf16 sublane packing), capped at
    MAX_BATCH_TILE; for larger batches keep >= 2 grid steps so both v7x
    TensorCores get work (no-op at tiny B and on v5e/v6e)."""
    TB = min(MAX_BATCH_TILE, _round_up(B, 16))
    if B > 16 and _round_up(B, TB) // TB < 2:
        TB = _round_up(pl.cdiv(B, 2), 16)
    Bp = _round_up(B, TB)
    return TB, Bp


def spd_nn_forward(state, action, prep):
    """state: (B, 56), action: (B, 50) -> (B, 50). Weights via prepare_params."""
    B = state.shape[0]
    TB, Bp = _choose_batch_tile(B)
    x = _pack_inputs(state, action, Bp)

    (w1, b1), (w2, b2), (w3, b3), (w4, b4) = prep
    H1, H2, H3 = HIDDEN_SIZES

    def resident(shape):
        # Same block every grid step -> DMA'd once, stays resident in VMEM.
        return pl.BlockSpec(shape, lambda i: (0, 0))

    in_specs = [
        pl.BlockSpec((TB, IN_PADDED), lambda i: (i, 0)),
        resident((IN_PADDED, H1)), resident((1, H1)),
        resident((H1, H2)), resident((1, H2)),
        resident((H2, H3)), resident((1, H3)),
        resident((H3, OUT_PADDED)), resident((1, OUT_PADDED)),
    ]

    out = pl.pallas_call(
        spd_mlp_kernel,
        out_shape=jax.ShapeDtypeStruct((Bp, OUT_PADDED), jnp.float32),
        grid=(Bp // TB,),
        in_specs=in_specs,
        out_specs=pl.BlockSpec((TB, OUT_PADDED), lambda i: (i, 0)),
        compiler_params=pltpu.CompilerParams(
            dimension_semantics=("parallel",)),   # megacore sharding on v7x
    )(x, w1, b1, w2, b2, w3, b3, w4, b4)

    return out[:B, :NUM_DESIRED_TORQUES]


def reference_forward_bf16(state, action, prep):
    """Pure-JAX reference mirroring the kernel's host packing + bf16/f32 mix."""
    B = state.shape[0]
    _, Bp = _choose_batch_tile(B)
    x = _pack_inputs(state, action, Bp)
    (w1, b1), (w2, b2), (w3, b3), (w4, b4) = prep
    h = jnp.dot(x, w1, preferred_element_type=jnp.float32) + b1
    h = jnp.maximum(h, 0.2 * h)
    h = jnp.dot(h.astype(jnp.bfloat16), w2, preferred_element_type=jnp.float32) + b2
    h = jnp.maximum(h, 0.2 * h)
    h = jnp.dot(h.astype(jnp.bfloat16), w3, preferred_element_type=jnp.float32) + b3
    h = jnp.maximum(h, 0.2 * h)
    out = jnp.dot(h.astype(jnp.bfloat16), w4, preferred_element_type=jnp.float32) + b4
    return out[:B, :NUM_DESIRED_TORQUES]


def reference_forward_f32(state, action, params, std):
    """Full-f32 reference matching the original PyTorch module semantics."""
    x = jnp.concatenate([state, action], axis=-1).astype(jnp.float32)
    h = x
    n = len(params)
    for i, (w, b) in enumerate(params):
        h = h @ w + b
        if i < n - 1:
            h = jnp.where(h > 0, h, 0.2 * h)   # LeakyReLU(0.2)
    return h * std


if __name__ == "__main__":
    key = jax.random.PRNGKey(0)
    pkey, skey, akey = jax.random.split(key, 3)

    params, std = init_params(pkey)
    prep = prepare_params(params, std)

    B = 8
    state = jax.random.normal(skey, (B, NUM_STATES), jnp.float32)
    action = jax.random.normal(akey, (B, NUM_ACTIONS), jnp.float32)

    out = spd_nn_forward(state, action, prep)
    out = jax.block_until_ready(out)

    assert out.shape == (B, NUM_DESIRED_TORQUES)

    # Exact-precision check against a bf16-matched reference.
    ref_bf16 = reference_forward_bf16(state, action, prep)
    assert jnp.allclose(out, ref_bf16, atol=5e-2, rtol=1e-2)

    # Semantic check against the original f32 PyTorch-equivalent math
    # (looser tolerance because the kernel uses bf16 matmul inputs).
    ref_f32 = reference_forward_f32(state, action, params, std)
    assert jnp.allclose(out, ref_f32, atol=2.0, rtol=5e-2)

    print("KERNEL_OK")
</pallas_src>

<mosaic_0001>
module attributes {stable_mosaic.version = 11 : i64} {
  func.func @spd_mlp_kernel(%arg0: i32, %arg1: memref<16x128xbf16, #tpu.memory_space<vmem>>, %arg2: memref<128x256xbf16, #tpu.memory_space<vmem>>, %arg3: memref<1x256xf32, #tpu.memory_space<vmem>>, %arg4: memref<256x256xbf16, #tpu.memory_space<vmem>>, %arg5: memref<1x256xf32, #tpu.memory_space<vmem>>, %arg6: memref<256x256xbf16, #tpu.memory_space<vmem>>, %arg7: memref<1x256xf32, #tpu.memory_space<vmem>>, %arg8: memref<256x128xbf16, #tpu.memory_space<vmem>>, %arg9: memref<1x128xf32, #tpu.memory_space<vmem>>, %arg10: memref<16x128xf32, #tpu.memory_space<vmem>>) attributes {dimension_semantics = [#tpu.dimension_semantics<parallel>], iteration_bounds = array<i64: 1>, scalar_prefetch = 0 : i64, scratch_operands = 0 : i64, tpu.core_type = #tpu.core_type<tc>, window_params = [{transform_indices = @transform_0, window_bounds = array<i64: 16, 128>}, {pipeline_mode = #tpu.pipeline_mode<synchronous>, transform_indices = @transform_1, window_bounds = array<i64: 128, 256>}, {pipeline_mode = #tpu.pipeline_mode<synchronous>, transform_indices = @transform_2, window_bounds = array<i64: 1, 256>}, {pipeline_mode = #tpu.pipeline_mode<synchronous>, transform_indices = @transform_3, window_bounds = array<i64: 256, 256>}, {pipeline_mode = #tpu.pipeline_mode<synchronous>, transform_indices = @transform_4, window_bounds = array<i64: 1, 256>}, {pipeline_mode = #tpu.pipeline_mode<synchronous>, transform_indices = @transform_5, window_bounds = array<i64: 256, 256>}, {pipeline_mode = #tpu.pipeline_mode<synchronous>, transform_indices = @transform_6, window_bounds = array<i64: 1, 256>}, {pipeline_mode = #tpu.pipeline_mode<synchronous>, transform_indices = @transform_7, window_bounds = array<i64: 256, 128>}, {pipeline_mode = #tpu.pipeline_mode<synchronous>, transform_indices = @transform_8, window_bounds = array<i64: 1, 128>}, {transform_indices = @transform_9, window_bounds = array<i64: 16, 128>}]} {
    %c0 = arith.constant 0 : index
    %c0_0 = arith.constant 0 : index
    %0 = vector.load %arg1[%c0, %c0_0] : memref<16x128xbf16, #tpu.memory_space<vmem>>, vector<16x128xbf16>
    %c0_1 = arith.constant 0 : index
    %c0_2 = arith.constant 0 : index
    %1 = vector.load %arg2[%c0_1, %c0_2] : memref<128x256xbf16, #tpu.memory_space<vmem>>, vector<128x256xbf16>
    %cst = arith.constant dense<0.000000e+00> : vector<16x256xf32>
    %2 = tpu.matmul %0, %1, %cst {dimension_numbers = #tpu.dot_dimension_numbers<[1], [0], [0], [1], [0, 0, 1, 1], [], []>} : vector<16x128xbf16>, vector<128x256xbf16>, vector<16x256xf32> -> vector<16x256xf32>
    %c0_3 = arith.constant 0 : index
    %c0_4 = arith.constant 0 : index
    %3 = vector.load %arg3[%c0_3, %c0_4] : memref<1x256xf32, #tpu.memory_space<vmem>>, vector<1x256xf32>
    %4 = vector.broadcast %3 : vector<1x256xf32> to vector<16x256xf32>
    %5 = arith.addf %2, %4 : vector<16x256xf32>
    %cst_5 = arith.constant 2.000000e-01 : f32
    %6 = vector.broadcast %cst_5 : f32 to vector<16x256xf32>
    %7 = arith.mulf %6, %5 : vector<16x256xf32>
    %8 = arith.maximumf %5, %7 : vector<16x256xf32>
    %9 = arith.truncf %8 : vector<16x256xf32> to vector<16x256xbf16>
    %c0_6 = arith.constant 0 : index
    %c0_7 = arith.constant 0 : index
    %10 = vector.load %arg4[%c0_6, %c0_7] : memref<256x256xbf16, #tpu.memory_space<vmem>>, vector<256x256xbf16>
    %cst_8 = arith.constant dense<0.000000e+00> : vector<16x256xf32>
    %11 = tpu.matmul %9, %10, %cst_8 {dimension_numbers = #tpu.dot_dimension_numbers<[1], [0], [0], [1], [0, 0, 1, 1], [], []>} : vector<16x256xbf16>, vector<256x256xbf16>, vector<16x256xf32> -> vector<16x256xf32>
    %c0_9 = arith.constant 0 : index
    %c0_10 = arith.constant 0 : index
    %12 = vector.load %arg5[%c0_9, %c0_10] : memref<1x256xf32, #tpu.memory_space<vmem>>, vector<1x256xf32>
    %13 = vector.broadcast %12 : vector<1x256xf32> to vector<16x256xf32>
    %14 = arith.addf %11, %13 : vector<16x256xf32>
    %cst_11 = arith.constant 2.000000e-01 : f32
    %15 = vector.broadcast %cst_11 : f32 to vector<16x256xf32>
    %16 = arith.mulf %15, %14 : vector<16x256xf32>
    %17 = arith.maximumf %14, %16 : vector<16x256xf32>
    %18 = arith.truncf %17 : vector<16x256xf32> to vector<16x256xbf16>
    %c0_12 = arith.constant 0 : index
    %c0_13 = arith.constant 0 : index
    %19 = vector.load %arg6[%c0_12, %c0_13] : memref<256x256xbf16, #tpu.memory_space<vmem>>, vector<256x256xbf16>
    %cst_14 = arith.constant dense<0.000000e+00> : vector<16x256xf32>
    %20 = tpu.matmul %18, %19, %cst_14 {dimension_numbers = #tpu.dot_dimension_numbers<[1], [0], [0], [1], [0, 0, 1, 1], [], []>} : vector<16x256xbf16>, vector<256x256xbf16>, vector<16x256xf32> -> vector<16x256xf32>
    %c0_15 = arith.constant 0 : index
    %c0_16 = arith.constant 0 : index
    %21 = vector.load %arg7[%c0_15, %c0_16] : memref<1x256xf32, #tpu.memory_space<vmem>>, vector<1x256xf32>
    %22 = vector.broadcast %21 : vector<1x256xf32> to vector<16x256xf32>
    %23 = arith.addf %20, %22 : vector<16x256xf32>
    %cst_17 = arith.constant 2.000000e-01 : f32
    %24 = vector.broadcast %cst_17 : f32 to vector<16x256xf32>
    %25 = arith.mulf %24, %23 : vector<16x256xf32>
    %26 = arith.maximumf %23, %25 : vector<16x256xf32>
    %27 = arith.truncf %26 : vector<16x256xf32> to vector<16x256xbf16>
    %c0_18 = arith.constant 0 : index
    %c0_19 = arith.constant 0 : index
    %28 = vector.load %arg8[%c0_18, %c0_19] : memref<256x128xbf16, #tpu.memory_space<vmem>>, vector<256x128xbf16>
    %cst_20 = arith.constant dense<0.000000e+00> : vector<16x128xf32>
    %29 = tpu.matmul %27, %28, %cst_20 {dimension_numbers = #tpu.dot_dimension_numbers<[1], [0], [0], [1], [0, 0, 1, 1], [], []>} : vector<16x256xbf16>, vector<256x128xbf16>, vector<16x128xf32> -> vector<16x128xf32>
    %c0_21 = arith.constant 0 : index
    %c0_22 = arith.constant 0 : index
    %30 = vector.load %arg9[%c0_21, %c0_22] : memref<1x128xf32, #tpu.memory_space<vmem>>, vector<1x128xf32>
    %31 = vector.broadcast %30 : vector<1x128xf32> to vector<16x128xf32>
    %32 = arith.addf %29, %31 : vector<16x128xf32>
    %c0_23 = arith.constant 0 : index
    %c0_24 = arith.constant 0 : index
    %33 = vector.load %arg10[%c0_23, %c0_24] : memref<16x128xf32, #tpu.memory_space<vmem>>, vector<16x128xf32>
    tpu.vector_store %arg10[%c0_23, %c0_24], %32 {strides = array<i32>} : memref<16x128xf32, #tpu.memory_space<vmem>>, vector<16x128xf32>,
    return
  }
  func.func @transform_0(%arg0: i32) -> (i32, i32) {
    %c0_i32 = arith.constant 0 : i32
    %c0_i32_0 = arith.constant 0 : i32
    return %arg0, %c0_i32 : i32, i32
  }
  func.func @transform_1(%arg0: i32) -> (i32, i32) {
    %c0_i32 = arith.constant 0 : i32
    %c0_i32_0 = arith.constant 0 : i32
    %c0_i32_1 = arith.constant 0 : i32
    return %c0_i32, %c0_i32_0 : i32, i32
  }
  func.func @transform_2(%arg0: i32) -> (i32, i32) {
    %c0_i32 = arith.constant 0 : i32
    %c0_i32_0 = arith.constant 0 : i32
    %c0_i32_1 = arith.constant 0 : i32
    return %c0_i32, %c0_i32_0 : i32, i32
  }
  func.func @transform_3(%arg0: i32) -> (i32, i32) {
    %c0_i32 = arith.constant 0 : i32
    %c0_i32_0 = arith.constant 0 : i32
    %c0_i32_1 = arith.constant 0 : i32
    return %c0_i32, %c0_i32_0 : i32, i32
  }
  func.func @transform_4(%arg0: i32) -> (i32, i32) {
    %c0_i32 = arith.constant 0 : i32
    %c0_i32_0 = arith.constant 0 : i32
    %c0_i32_1 = arith.constant 0 : i32
    return %c0_i32, %c0_i32_0 : i32, i32
  }
  func.func @transform_5(%arg0: i32) -> (i32, i32) {
    %c0_i32 = arith.constant 0 : i32
    %c0_i32_0 = arith.constant 0 : i32
    %c0_i32_1 = arith.constant 0 : i32
    return %c0_i32, %c0_i32_0 : i32, i32
  }
  func.func @transform_6(%arg0: i32) -> (i32, i32) {
    %c0_i32 = arith.constant 0 : i32
    %c0_i32_0 = arith.constant 0 : i32
    %c0_i32_1 = arith.constant 0 : i32
    return %c0_i32, %c0_i32_0 : i32, i32
  }
  func.func @transform_7(%arg0: i32) -> (i32, i32) {
    %c0_i32 = arith.constant 0 : i32
    %c0_i32_0 = arith.constant 0 : i32
    %c0_i32_1 = arith.constant 0 : i32
    return %c0_i32, %c0_i32_0 : i32, i32
  }
  func.func @transform_8(%arg0: i32) -> (i32, i32) {
    %c0_i32 = arith.constant 0 : i32
    %c0_i32_0 = arith.constant 0 : i32
    %c0_i32_1 = arith.constant 0 : i32
    return %c0_i32, %c0_i32_0 : i32, i32
  }
  func.func @transform_9(%arg0: i32) -> (i32, i32) {
    %c0_i32 = arith.constant 0 : i32
    %c0_i32_0 = arith.constant 0 : i32
    return %arg0, %c0_i32 : i32, i32
  }
}

</mosaic_0001>

<llo_original>
// kernel: tpu_custom_call.1
$region0: #{tpu_custom_call.1}
  #allocation0 [shape = 'u32[]', space=smem, size = 0x4, offset = 0x4, fixed_abs, tag = 'smem constant byte address 0x4 - core index']
  #allocation1 [shape = 'u32[144,128]{1,0:T(1,128)}', space=vmem, size = 0x12000, scoped, tag = 'internal scratch']
  %s0 = inlined_call_operand.hbm [shape: bf16[16,128], index: 0, kind: input, shape index: {}]
  %s1 = inlined_call_operand.hbm [shape: bf16[128,256], index: 1, kind: input, shape index: {}]
  %s2 = inlined_call_operand.vmem [shape: f32[1,256], index: 2, kind: input, shape index: {}]
  %s3 = inlined_call_operand.hbm [shape: bf16[256,256], index: 3, kind: input, shape index: {}]
  %s4 = inlined_call_operand.vmem [shape: f32[1,256], index: 4, kind: input, shape index: {}]
  %s5 = inlined_call_operand.hbm [shape: bf16[256,256], index: 5, kind: input, shape index: {}]
  %s6 = inlined_call_operand.vmem [shape: f32[1,256], index: 6, kind: input, shape index: {}]
  %s7 = inlined_call_operand.hbm [shape: bf16[256,128], index: 7, kind: input, shape index: {}]
  %s8 = inlined_call_operand.vmem [shape: f32[1,128], index: 8, kind: input, shape index: {}]
  %s9 = inlined_call_operand.hbm [shape: f32[16,128], index: 9, kind: output, shape index: {}]
  %s10 = sld [smem:[#allocation0]]
  $region66: #{tpu_custom_call.1} parent=0
    _
  %s12 = ssub.s32 1, %s10
  %s13 = scalar_select 0, %s12, %s10
  $region1: #{tpu_custom_call.1} parent=0
    #allocation2 [shape = 'u8[4096]{0}', space=vmem, size = 0x1000, scoped, tag = 'input window, operand 0, single buffered']
    #allocation3 [shape = 's32[1]{0}', space=sflag, size = 0x4, scoped, tag = 'scoped memory for tpu_custom_call.1']
    #allocation4 [shape = 's32[1]{0}', space=sflag, size = 0x4, scoped, tag = 'scoped memory for tpu_custom_call.1']
    #allocation5 [shape = 'u8[65536]{0}', space=vmem, size = 0x10000, scoped, tag = 'input window, operand 1, single buffered']
    #allocation6 [shape = 's32[1]{0}', space=sflag, size = 0x4, scoped, tag = 'scoped memory for tpu_custom_call.1']
    #allocation7 [shape = 'u8[131072]{0}', space=vmem, size = 0x20000, scoped, tag = 'input window, operand 3, single buffered']
    #allocation8 [shape = 'u8[131072]{0}', space=vmem, size = 0x20000, scoped, tag = 'input window, operand 5, single buffered']
    #allocation9 [shape = 's32[1]{0}', space=sflag, size = 0x4, scoped, tag = 'scoped memory for tpu_custom_call.1']
    #allocation10 [shape = 'u8[65536]{0}', space=vmem, size = 0x10000, scoped, tag = 'input window, operand 7, single buffered']
    #allocation11 [shape = 'u8[8192]{0}', space=vmem, size = 0x2000, scoped, tag = 'output window, operand 0, single buffered']
    %14 = vsyncpa [#allocation3], 0
    %15 = vsyncpa [#allocation6], 0
    %16 = vsyncpa [#allocation9], 0
    %17 = vsyncpa [#allocation4], 0
    // Predicated region
    $region2: #{tpu_custom_call.1} parent=1 // pred_check
      _
    $region3: #{tpu_custom_call.1} parent=1 // pred_check_branch
      %19 = sbr.rel (0) target = $region5
    $region4: #{tpu_custom_call.1} parent=1 // pred_region
      %s21 = ssub.s32 128, 128
      %22 = vsyncadd [#allocation3], %s21
      %s23 = sshll.u32 [#allocation2], 4
      %s24 = int_to_ptr.vmem [resolvable:$true] %s23
      %29 = dma.hbm_to_vmem [thread:$0]  %s0, 128, %s24, [#allocation3], 64, 64, 4
    $region5: #{tpu_custom_call.1} parent=1 // pred_fallthru
      _
    // Predicated region
    $region6: #{tpu_custom_call.1} parent=1 // pred_check
      _
    $region7: #{tpu_custom_call.1} parent=1 // pred_check_branch
      %31 = sbr.rel (0) target = $region9
    $region8: #{tpu_custom_call.1} parent=1 // pred_region
      %s33 = ssub.s32 2048, 2048
      %34 = vsyncadd [#allocation6], %s33
      %s35 = sshll.u32 [#allocation5], 4
      %s36 = int_to_ptr.vmem [resolvable:$true] %s35
      %41 = dma.hbm_to_vmem [thread:$0]  %s1, 2048, %s36, [#allocation6], 128, 128, 8
    $region9: #{tpu_custom_call.1} parent=1 // pred_fallthru
      _
    // Predicated region
    $region10: #{tpu_custom_call.1} parent=1 // pred_check
      _
    $region11: #{tpu_custom_call.1} parent=1 // pred_check_branch
      %43 = sbr.rel (0) target = $region13
    $region12: #{tpu_custom_call.1} parent=1 // pred_region
      _
    $region13: #{tpu_custom_call.1} parent=1 // pred_fallthru
      _
    // Predicated region
    $region14: #{tpu_custom_call.1} parent=1 // pred_check
      _
    $region15: #{tpu_custom_call.1} parent=1 // pred_check_branch
      %45 = sbr.rel (0) target = $region17
    $region16: #{tpu_custom_call.1} parent=1 // pred_region
      %s47 = ssub.s32 4096, 4096
      %48 = vsyncadd [#allocation6], %s47
      %s49 = sshll.u32 [#allocation7], 4
      %s50 = int_to_ptr.vmem [resolvable:$true] %s49
      %55 = dma.hbm_to_vmem [thread:$0]  %s3, 4096, %s50, [#allocation6], 128, 128, 8
    $region17: #{tpu_custom_call.1} parent=1 // pred_fallthru
      _
    // Predicated region
    $region18: #{tpu_custom_call.1} parent=1 // pred_check
      _
    $region19: #{tpu_custom_call.1} parent=1 // pred_check_branch
      %57 = sbr.rel (0) target = $region21
    $region20: #{tpu_custom_call.1} parent=1 // pred_region
      _
    $region21: #{tpu_custom_call.1} parent=1 // pred_fallthru
      _
    // Predicated region
    $region22: #{tpu_custom_call.1} parent=1 // pred_check
      _
    $region23: #{tpu_custom_call.1} parent=1 // pred_check_branch
      %59 = sbr.rel (0) target = $region25
    $region24: #{tpu_custom_call.1} parent=1 // pred_region
      %s61 = ssub.s32 4096, 4096
      %62 = vsyncadd [#allocation9], %s61
      %s63 = sshll.u32 [#allocation8], 4
      %s64 = int_to_ptr.vmem [resolvable:$true] %s63
      %69 = dma.hbm_to_vmem [thread:$0]  %s5, 4096, %s64, [#allocation9], 128, 128, 8
    $region25: #{tpu_custom_call.1} parent=1 // pred_fallthru
      _
    // Predicated region
    $region26: #{tpu_custom_call.1} parent=1 // pred_check
      _
    $region27: #{tpu_custom_call.1} parent=1 // pred_check_branch
      %71 = sbr.rel (0) target = $region29
    $region28: #{tpu_custom_call.1} parent=1 // pred_region
      _
    $region29: #{tpu_custom_call.1} parent=1 // pred_fallthru
      _
    // Predicated region
    $region30: #{tpu_custom_call.1} parent=1 // pred_check
      _
    $region31: #{tpu_custom_call.1} parent=1 // pred_check_branch
      %73 = sbr.rel (0) target = $region33
    $region32: #{tpu_custom_call.1} parent=1 // pred_region
      %s75 = ssub.s32 2048, 2048
      %76 = vsyncadd [#allocation9], %s75
      %s77 = sshll.u32 [#allocation10], 4
      %s78 = int_to_ptr.vmem [resolvable:$true] %s77
      %83 = dma.hbm_to_vmem [thread:$0]  %s7, 2048, %s78, [#allocation9], 64, 64, 4
    $region33: #{tpu_custom_call.1} parent=1 // pred_fallthru
      _
    // Predicated region
    $region34: #{tpu_custom_call.1} parent=1 // pred_check
      _
    $region35: #{tpu_custom_call.1} parent=1 // pred_check_branch
      %85 = sbr.rel (0) target = $region37
    $region36: #{tpu_custom_call.1} parent=1 // pred_region
      _
    $region37: #{tpu_custom_call.1} parent=1 // pred_fallthru
      _
    // Predicated region
    $region38: #{tpu_custom_call.1} parent=1 // pred_check
      _
    $region39: #{tpu_custom_call.1} parent=1 // pred_check_branch
      %87 = sbr.rel (0) target = $region41
    $region40: #{tpu_custom_call.1} parent=1 // pred_region
      %88 = dma.done [#allocation3], 128
    $region41: #{tpu_custom_call.1} parent=1 // pred_fallthru
      _
    // Predicated region
    $region42: #{tpu_custom_call.1} parent=1 // pred_check
      _
    $region43: #{tpu_custom_call.1} parent=1 // pred_check_branch
      %90 = sbr.rel (0) target = $region45
    $region44: #{tpu_custom_call.1} parent=1 // pred_region
      %91 = dma.done [#allocation6], 2048
    $region45: #{tpu_custom_call.1} parent=1 // pred_fallthru
      _
    // Predicated region
    $region46: #{tpu_custom_call.1} parent=1 // pred_check
      _
    $region47: #{tpu_custom_call.1} parent=1 // pred_check_branch
      %93 = sbr.rel (0) target = $region49
    $region48: #{tpu_custom_call.1} parent=1 // pred_region
      %94 = dma.done [#allocation6], 4096
    $region49: #{tpu_custom_call.1} parent=1 // pred_fallthru
      _
    // Predicated region
    $region50: #{tpu_custom_call.1} parent=1 // pred_check
      _
    $region51: #{tpu_custom_call.1} parent=1 // pred_check_branch
      %96 = sbr.rel (0) target = $region53
    $region52: #{tpu_custom_call.1} parent=1 // pred_region
      %97 = dma.done [#allocation9], 4096
    $region53: #{tpu_custom_call.1} parent=1 // pred_fallthru
      _
    // Predicated region
    $region54: #{tpu_custom_call.1} parent=1 // pred_check
      _
    $region55: #{tpu_custom_call.1} parent=1 // pred_check_branch
      %99 = sbr.rel (0) target = $region57
    $region56: #{tpu_custom_call.1} parent=1 // pred_region
      %100 = dma.done [#allocation9], 2048
    $region57: #{tpu_custom_call.1} parent=1 // pred_fallthru
      _
    %v102 = vld [vmem:[#allocation2] sm:$0xf]
    %v103 = vld [vmem:[#allocation2 + $0x4] sm:$0xf]
    %v104 = vld [vmem:[#allocation5] sm:$0xff]
    %v105 = vld [vmem:[#allocation5 + $0x8] sm:$0xff]
    %v106 = vld [vmem:[#allocation5 + $0x10] sm:$0xff]
    %v107 = vld [vmem:[#allocation5 + $0x18] sm:$0xff]
    %v108 = vld [vmem:[#allocation5 + $0x20] sm:$0xff]
    %v109 = vld [vmem:[#allocation5 + $0x28] sm:$0xff]
    %v110 = vld [vmem:[#allocation5 + $0x30] sm:$0xff]
    %v111 = vld [vmem:[#allocation5 + $0x38] sm:$0xff]
    %v112 = vld [vmem:[#allocation5 + $0x40] sm:$0xff]
    %v113 = vld [vmem:[#allocation5 + $0x48] sm:$0xff]
    %v114 = vld [vmem:[#allocation5 + $0x50] sm:$0xff]
    %v115 = vld [vmem:[#allocation5 + $0x58] sm:$0xff]
    %v116 = vld [vmem:[#allocation5 + $0x60] sm:$0xff]
    %v117 = vld [vmem:[#allocation5 + $0x68] sm:$0xff]
    %v118 = vld [vmem:[#allocation5 + $0x70] sm:$0xff]
    %v119 = vld [vmem:[#allocation5 + $0x78] sm:$0xff]
    %v120 = vld [vmem:[%s2] sm:$0x3]
    %v122 = vlaneseq
    %v123 = vshrl.u32 %v122, 7
    %v124 = vsub.s32 0, %v123
    %v125 = vrot.slane %v120, %v124
    %v126 = vlaneseq
    %v127 = vshrl.u32 %v126, 7
    %v128 = vsub.s32 1, %v127
    %v129 = vrot.slane %v120, %v128
    %v134 = vunpack.c.l.b16 %v102
    %v135 = vunpack.c.l.b16 %v103
    %v136 = vpack.c.b16 %v135, %v134
    %v154 = vunpack.c.l.b16 %v104
    %v155 = vunpack.c.h.b16 %v104
    %v156 = vunpack.c.l.b16 %v105
    %v157 = vunpack.c.h.b16 %v105
    %v158 = vunpack.c.l.b16 %v106
    %v159 = vunpack.c.h.b16 %v106
    %v160 = vunpack.c.l.b16 %v107
    %v161 = vunpack.c.h.b16 %v107
    %v162 = vunpack.c.l.b16 %v108
    %v163 = vunpack.c.h.b16 %v108
    %v164 = vunpack.c.l.b16 %v109
    %v165 = vunpack.c.h.b16 %v109
    %v166 = vunpack.c.l.b16 %v110
    %v167 = vunpack.c.h.b16 %v110
    %v168 = vunpack.c.l.b16 %v111
    %v169 = vunpack.c.h.b16 %v111
    %v170 = vunpack.c.l.b16 %v112
    %v171 = vunpack.c.h.b16 %v112
    %v172 = vunpack.c.l.b16 %v113
    %v173 = vunpack.c.h.b16 %v113
    %v174 = vunpack.c.l.b16 %v114
    %v175 = vunpack.c.h.b16 %v114
    %v176 = vunpack.c.l.b16 %v115
    %v177 = vunpack.c.h.b16 %v115
    %v178 = vunpack.c.l.b16 %v116
    %v179 = vunpack.c.h.b16 %v116
    %v180 = vunpack.c.l.b16 %v117
    %v181 = vunpack.c.h.b16 %v117
    %v182 = vunpack.c.l.b16 %v118
    %v183 = vunpack.c.h.b16 %v118
    %v184 = vunpack.c.l.b16 %v119
    %v185 = vunpack.c.h.b16 %v119
    %v186 = vpack.c.b16 %v156, %v154
    %v187 = vpack.c.b16 %v157, %v155
    %v188 = vpack.c.b16 %v160, %v158
    %v189 = vpack.c.b16 %v161, %v159
    %v190 = vpack.c.b16 %v164, %v162
    %v191 = vpack.c.b16 %v165, %v163
    %v192 = vpack.c.b16 %v168, %v166
    %v193 = vpack.c.b16 %v169, %v167
    %v194 = vpack.c.b16 %v172, %v170
    %v195 = vpack.c.b16 %v173, %v171
    %v196 = vpack.c.b16 %v176, %v174
    %v197 = vpack.c.b16 %v177, %v175
    %v198 = vpack.c.b16 %v180, %v178
    %v199 = vpack.c.b16 %v181, %v179
    %v200 = vpack.c.b16 %v184, %v182
    %v201 = vpack.c.b16 %v185, %v183
    %218 = vmatprep.subr.bf16.mxu0 %v201
    %219 = vmatpush1.bf16.msra.mxu0 %v200
    %220 = vmatprep.subr.bf16.mxu0 %v199
    %221 = vmatpush1.bf16.msra.mxu0 %v198
    %222 = vmatprep.subr.bf16.mxu0 %v197
    %223 = vmatpush1.bf16.msra.mxu0 %v196
    %224 = vmatprep.subr.bf16.mxu0 %v195
    %225 = vmatpush1.bf16.msra.mxu0 %v194
    %226 = vmatprep.subr.bf16.mxu0 %v193
    %227 = vmatpush1.bf16.msra.mxu0 %v192
    %228 = vmatprep.subr.bf16.mxu0 %v191
    %229 = vmatpush1.bf16.msra.mxu0 %v190
    %230 = vmatprep.subr.bf16.mxu0 %v189
    %231 = vmatpush1.bf16.msra.mxu0 %v188
    %232 = vmatprep.subr.bf16.mxu0 %v187
    %233 = vmatpush1.bf16.msra.mxu0 %v186
    %234 = vmatprep.subr.bf16.mxu0 0
    %235 = vmatpush2.bf16.msra.mxu0 0
    %236 = vmatprep.subr.bf16.mxu0 0
    %237 = vmatpush2.bf16.msra.mxu0 0
    %238 = vmatprep.subr.bf16.mxu0 0
    %239 = vmatpush2.bf16.msra.mxu0 0
    %240 = vmatprep.subr.bf16.mxu0 0
    %241 = vmatpush2.bf16.msra.mxu0 0
    %242 = vmatprep.subr.bf16.mxu0 0
    %243 = vmatpush2.bf16.msra.mxu0 0
    %244 = vmatprep.subr.bf16.mxu0 0
    %245 = vmatpush2.bf16.msra.mxu0 0
    %246 = vmatprep.subr.bf16.mxu0 0
    %247 = vmatpush2.bf16.msra.mxu0 0
    %248 = vmatprep.subr.bf16.mxu0 0
    %249 = vmatpush2.bf16.msra.mxu0 0
    %250 = vmatprep.mubr.bf16.mxu0 0
    %251 = vmatmul.mubr.bf16.gmra.mxu0 %v136
    %v252 = vpop.f32.mrf.mxu0
    %v253 = vadd.f32 %v125, %v252
    %v254 = vpop.f32.mrf.mxu0
    %v255 = vadd.f32 %v129, %v254
    %v256 = vpop.f32.mrf.mxu0
    %v257 = vadd.f32 %v125, %v256
    %v258 = vpop.f32.mrf.mxu0
    %v259 = vadd.f32 %v129, %v258
    %260 = vdwg.mxu0
    %v261 = vmul.f32 %v253, 0.2
    %v262 = vmul.f32 %v255, 0.2
    %v263 = vmul.f32 %v257, 0.2
    %v264 = vmul.f32 %v259, 0.2
    %v265 = vmax.f32 %v253, %v261
    %v266 = vmax.f32 %v255, %v262
    %v267 = vmax.f32 %v257, %v263
    %v268 = vmax.f32 %v259, %v264
    %v269 = vpack.c.bf16 %v267, %v265
    %v270 = vpack.c.bf16 %v268, %v266
    %v271 = vld [vmem:[#allocation7] sm:$0xff]
    %v272 = vld [vmem:[#allocation7 + $0x8] sm:$0xff]
    %v273 = vld [vmem:[#allocation7 + $0x10] sm:$0xff]
    %v274 = vld [vmem:[#allocation7 + $0x18] sm:$0xff]
    %v275 = vld [vmem:[#allocation7 + $0x20] sm:$0xff]
    %v276 = vld [vmem:[#allocation7 + $0x28] sm:$0xff]
    %v277 = vld [vmem:[#allocation7 + $0x30] sm:$0xff]
    %v278 = vld [vmem:[#allocation7 + $0x38] sm:$0xff]
    %v279 = vld [vmem:[#allocation7 + $0x40] sm:$0xff]
    %v280 = vld [vmem:[#allocation7 + $0x48] sm:$0xff]
    %v281 = vld [vmem:[#allocation7 + $0x50] sm:$0xff]
    %v282 = vld [vmem:[#allocation7 + $0x58] sm:$0xff]
    %v283 = vld [vmem:[#allocation7 + $0x60] sm:$0xff]
    %v284 = vld [vmem:[#allocation7 + $0x68] sm:$0xff]
    %v285 = vld [vmem:[#allocation7 + $0x70] sm:$0xff]
    %v286 = vld [vmem:[#allocation7 + $0x78] sm:$0xff]
    %v287 = vld [vmem:[#allocation7 + $0x80] sm:$0xff]
    %v288 = vld [vmem:[#allocation7 + $0x88] sm:$0xff]
    %v289 = vld [vmem:[#allocation7 + $0x90] sm:$0xff]
    %v290 = vld [vmem:[#allocation7 + $0x98] sm:$0xff]
    %v291 = vld [vmem:[#allocation7 + $0xa0] sm:$0xff]
    %v292 = vld [vmem:[#allocation7 + $0xa8] sm:$0xff]
    %v293 = vld [vmem:[#allocation7 + $0xb0] sm:$0xff]
    %v294 = vld [vmem:[#allocation7 + $0xb8] sm:$0xff]
    %v295 = vld [vmem:[#allocation7 + $0xc0] sm:$0xff]
    %v296 = vld [vmem:[#allocation7 + $0xc8] sm:$0xff]
    %v297 = vld [vmem:[#allocation7 + $0xd0] sm:$0xff]
    %v298 = vld [vmem:[#allocation7 + $0xd8] sm:$0xff]
    %v299 = vld [vmem:[#allocation7 + $0xe0] sm:$0xff]
    %v300 = vld [vmem:[#allocation7 + $0xe8] sm:$0xff]
    %v301 = vld [vmem:[#allocation7 + $0xf0] sm:$0xff]
    %v302 = vld [vmem:[#allocation7 + $0xf8] sm:$0xff]
    %v303 = vld [vmem:[%s4] sm:$0x3]
    %v305 = vlaneseq
    %v306 = vshrl.u32 %v305, 7
    %v307 = vsub.s32 0, %v306
    %v308 = vrot.slane %v303, %v307
    %v309 = vlaneseq
    %v310 = vshrl.u32 %v309, 7
    %v311 = vsub.s32 1, %v310
    %v312 = vrot.slane %v303, %v311
    %v347 = vunpack.c.l.b16 %v271
    %v348 = vunpack.c.h.b16 %v271
    %v349 = vunpack.c.l.b16 %v272
    %v350 = vunpack.c.h.b16 %v272
    %v351 = vunpack.c.l.b16 %v273
    %v352 = vunpack.c.h.b16 %v273
    %v353 = vunpack.c.l.b16 %v274
    %v354 = vunpack.c.h.b16 %v274
    %v355 = vunpack.c.l.b16 %v275
    %v356 = vunpack.c.h.b16 %v275
    %v357 = vunpack.c.l.b16 %v276
    %v358 = vunpack.c.h.b16 %v276
    %v359 = vunpack.c.l.b16 %v277
    %v360 = vunpack.c.h.b16 %v277
    %v361 = vunpack.c.l.b16 %v278
    %v362 = vunpack.c.h.b16 %v278
    %v363 = vunpack.c.l.b16 %v279
    %v364 = vunpack.c.h.b16 %v279
    %v365 = vunpack.c.l.b16 %v280
    %v366 = vunpack.c.h.b16 %v280
    %v367 = vunpack.c.l.b16 %v281
    %v368 = vunpack.c.h.b16 %v281
    %v369 = vunpack.c.l.b16 %v282
    %v370 = vunpack.c.h.b16 %v282
    %v371 = vunpack.c.l.b16 %v283
    %v372 = vunpack.c.h.b16 %v283
    %v373 = vunpack.c.l.b16 %v284
    %v374 = vunpack.c.h.b16 %v284
    %v375 = vunpack.c.l.b16 %v285
    %v376 = vunpack.c.h.b16 %v285
    %v377 = vunpack.c.l.b16 %v286
    %v378 = vunpack.c.h.b16 %v286
    %v379 = vunpack.c.l.b16 %v287
    %v380 = vunpack.c.h.b16 %v287
    %v381 = vunpack.c.l.b16 %v288
    %v382 = vunpack.c.h.b16 %v288
    %v383 = vunpack.c.l.b16 %v289
    %v384 = vunpack.c.h.b16 %v289
    %v385 = vunpack.c.l.b16 %v290
    %v386 = vunpack.c.h.b16 %v290
    %v387 = vunpack.c.l.b16 %v291
    %v388 = vunpack.c.h.b16 %v291
    %v389 = vunpack.c.l.b16 %v292
    %v390 = vunpack.c.h.b16 %v292
    %v391 = vunpack.c.l.b16 %v293
    %v392 = vunpack.c.h.b16 %v293
    %v393 = vunpack.c.l.b16 %v294
    %v394 = vunpack.c.h.b16 %v294
    %v395 = vunpack.c.l.b16 %v295
    %v396 = vunpack.c.h.b16 %v295
    %v397 = vunpack.c.l.b16 %v296
    %v398 = vunpack.c.h.b16 %v296
    %v399 = vunpack.c.l.b16 %v297
    %v400 = vunpack.c.h.b16 %v297
    %v401 = vunpack.c.l.b16 %v298
    %v402 = vunpack.c.h.b16 %v298
    %v403 = vunpack.c.l.b16 %v299
    %v404 = vunpack.c.h.b16 %v299
    %v405 = vunpack.c.l.b16 %v300
    %v406 = vunpack.c.h.b16 %v300
    %v407 = vunpack.c.l.b16 %v301
    %v408 = vunpack.c.h.b16 %v301
    %v409 = vunpack.c.l.b16 %v302
    %v410 = vunpack.c.h.b16 %v302
    %v411 = vpack.c.b16 %v349, %v347
    %v412 = vpack.c.b16 %v350, %v348
    %v413 = vpack.c.b16 %v353, %v351
    %v414 = vpack.c.b16 %v354, %v352
    %v415 = vpack.c.b16 %v357, %v355
    %v416 = vpack.c.b16 %v358, %v356
    %v417 = vpack.c.b16 %v361, %v359
    %v418 = vpack.c.b16 %v362, %v360
    %v419 = vpack.c.b16 %v365, %v363
    %v420 = vpack.c.b16 %v366, %v364
    %v421 = vpack.c.b16 %v369, %v367
    %v422 = vpack.c.b16 %v370, %v368
    %v423 = vpack.c.b16 %v373, %v371
    %v424 = vpack.c.b16 %v374, %v372
    %v425 = vpack.c.b16 %v377, %v375
    %v426 = vpack.c.b16 %v378, %v376
    %v427 = vpack.c.b16 %v381, %v379
    %v428 = vpack.c.b16 %v382, %v380
    %v429 = vpack.c.b16 %v385, %v383
    %v430 = vpack.c.b16 %v386, %v384
    %v431 = vpack.c.b16 %v389, %v387
    %v432 = vpack.c.b16 %v390, %v388
    %v433 = vpack.c.b16 %v393, %v391
    %v434 = vpack.c.b16 %v394, %v392
    %v435 = vpack.c.b16 %v397, %v395
    %v436 = vpack.c.b16 %v398, %v396
    %v437 = vpack.c.b16 %v401, %v399
    %v438 = vpack.c.b16 %v402, %v400
    %v439 = vpack.c.b16 %v405, %v403
    %v440 = vpack.c.b16 %v406, %v404
    %v441 = vpack.c.b16 %v409, %v407
    %v442 = vpack.c.b16 %v410, %v408
    %475 = vmatprep.subr.bf16.mxu0 %v426
    %476 = vmatpush1.bf16.msra.mxu0 %v425
    %477 = vmatprep.subr.bf16.mxu0 %v424
    %478 = vmatpush1.bf16.msra.mxu0 %v423
    %479 = vmatprep.subr.bf16.mxu0 %v422
    %480 = vmatpush1.bf16.msra.mxu0 %v421
    %481 = vmatprep.subr.bf16.mxu0 %v420
    %482 = vmatpush1.bf16.msra.mxu0 %v419
    %483 = vmatprep.subr.bf16.mxu0 %v418
    %484 = vmatpush1.bf16.msra.mxu0 %v417
    %485 = vmatprep.subr.bf16.mxu0 %v416
    %486 = vmatpush1.bf16.msra.mxu0 %v415
    %487 = vmatprep.subr.bf16.mxu0 %v414
    %488 = vmatpush1.bf16.msra.mxu0 %v413
    %489 = vmatprep.subr.bf16.mxu0 %v412
    %490 = vmatpush1.bf16.msra.mxu0 %v411
    %491 = vmatprep.subr.bf16.mxu0 %v442
    %492 = vmatpush2.bf16.msra.mxu0 %v441
    %493 = vmatprep.subr.bf16.mxu0 %v440
    %494 = vmatpush2.bf16.msra.mxu0 %v439
    %495 = vmatprep.subr.bf16.mxu0 %v438
    %496 = vmatpush2.bf16.msra.mxu0 %v437
    %497 = vmatprep.subr.bf16.mxu0 %v436
    %498 = vmatpush2.bf16.msra.mxu0 %v435
    %499 = vmatprep.subr.bf16.mxu0 %v434
    %500 = vmatpush2.bf16.msra.mxu0 %v433
    %501 = vmatprep.subr.bf16.mxu0 %v432
    %502 = vmatpush2.bf16.msra.mxu0 %v431
    %503 = vmatprep.subr.bf16.mxu0 %v430
    %504 = vmatpush2.bf16.msra.mxu0 %v429
    %505 = vmatprep.subr.bf16.mxu0 %v428
    %506 = vmatpush2.bf16.msra.mxu0 %v427
    %507 = vmatprep.mubr.bf16.mxu0 %v270
    %508 = vmatmul.mubr.bf16.gmra.mxu0 %v269
    %v509 = vpop.f32.mrf.mxu0
    %v510 = vadd.f32 %v308, %v509
    %v511 = vpop.f32.mrf.mxu0
    %v512 = vadd.f32 %v312, %v511
    %v513 = vpop.f32.mrf.mxu0
    %v514 = vadd.f32 %v308, %v513
    %v515 = vpop.f32.mrf.mxu0
    %v516 = vadd.f32 %v312, %v515
    %517 = vdwg.mxu0
    %v518 = vmul.f32 %v510, 0.2
    %v519 = vmul.f32 %v512, 0.2
    %v520 = vmul.f32 %v514, 0.2
    %v521 = vmul.f32 %v516, 0.2
    %v522 = vmax.f32 %v510, %v518
    %v523 = vmax.f32 %v512, %v519
    %v524 = vmax.f32 %v514, %v520
    %v525 = vmax.f32 %v516, %v521
    %v526 = vpack.c.bf16 %v524, %v522
    %v527 = vpack.c.bf16 %v525, %v523
    %v528 = vld [vmem:[#allocation8] sm:$0xff]
    %v529 = vld [vmem:[#allocation8 + $0x8] sm:$0xff]
    %v530 = vld [vmem:[#allocation8 + $0x10] sm:$0xff]
    %v531 = vld [vmem:[#allocation8 + $0x18] sm:$0xff]
    %v532 = vld [vmem:[#allocation8 + $0x20] sm:$0xff]
    %v533 = vld [vmem:[#allocation8 + $0x28] sm:$0xff]
    %v534 = vld [vmem:[#allocation8 + $0x30] sm:$0xff]
    %v535 = vld [vmem:[#allocation8 + $0x38] sm:$0xff]
    %v536 = vld [vmem:[#allocation8 + $0x40] sm:$0xff]
    %v537 = vld [vmem:[#allocation8 + $0x48] sm:$0xff]
    %v538 = vld [vmem:[#allocation8 + $0x50] sm:$0xff]
    %v539 = vld [vmem:[#allocation8 + $0x58] sm:$0xff]
    %v540 = vld [vmem:[#allocation8 + $0x60] sm:$0xff]
    %v541 = vld [vmem:[#allocation8 + $0x68] sm:$0xff]
    %v542 = vld [vmem:[#allocation8 + $0x70] sm:$0xff]
    %v543 = vld [vmem:[#allocation8 + $0x78] sm:$0xff]
    %v544 = vld [vmem:[#allocation8 + $0x80] sm:$0xff]
    %v545 = vld [vmem:[#allocation8 + $0x88] sm:$0xff]
    %v546 = vld [vmem:[#allocation8 + $0x90] sm:$0xff]
    %v547 = vld [vmem:[#allocation8 + $0x98] sm:$0xff]
    %v548 = vld [vmem:[#allocation8 + $0xa0] sm:$0xff]
    %v549 = vld [vmem:[#allocation8 + $0xa8] sm:$0xff]
    %v550 = vld [vmem:[#allocation8 + $0xb0] sm:$0xff]
    %v551 = vld [vmem:[#allocation8 + $0xb8] sm:$0xff]
    %v552 = vld [vmem:[#allocation8 + $0xc0] sm:$0xff]
    %v553 = vld [vmem:[#allocation8 + $0xc8] sm:$0xff]
    %v554 = vld [vmem:[#allocation8 + $0xd0] sm:$0xff]
    %v555 = vld [vmem:[#allocation8 + $0xd8] sm:$0xff]
    %v556 = vld [vmem:[#allocation8 + $0xe0] sm:$0xff]
    %v557 = vld [vmem:[#allocation8 + $0xe8] sm:$0xff]
    %v558 = vld [vmem:[#allocation8 + $0xf0] sm:$0xff]
    %v559 = vld [vmem:[#allocation8 + $0xf8] sm:$0xff]
    %v560 = vld [vmem:[%s6] sm:$0x3]
    %v562 = vlaneseq
    %v563 = vshrl.u32 %v562, 7
    %v564 = vsub.s32 0, %v563
    %v565 = vrot.slane %v560, %v564
    %v566 = vlaneseq
    %v567 = vshrl.u32 %v566, 7
    %v568 = vsub.s32 1, %v567
    %v569 = vrot.slane %v560, %v568
    %v604 = vunpack.c.l.b16 %v528
    %v605 = vunpack.c.h.b16 %v528
    %v606 = vunpack.c.l.b16 %v529
    %v607 = vunpack.c.h.b16 %v529
    %v608 = vunpack.c.l.b16 %v530
    %v609 = vunpack.c.h.b16 %v530
    %v610 = vunpack.c.l.b16 %v531
    %v611 = vunpack.c.h.b16 %v531
    %v612 = vunpack.c.l.b16 %v532
    %v613 = vunpack.c.h.b16 %v532
    %v614 = vunpack.c.l.b16 %v533
    %v615 = vunpack.c.h.b16 %v533
    %v616 = vunpack.c.l.b16 %v534
    %v617 = vunpack.c.h.b16 %v534
    %v618 = vunpack.c.l.b16 %v535
    %v619 = vunpack.c.h.b16 %v535
    %v620 = vunpack.c.l.b16 %v536
    %v621 = vunpack.c.h.b16 %v536
    %v622 = vunpack.c.l.b16 %v537
    %v623 = vunpack.c.h.b16 %v537
    %v624 = vunpack.c.l.b16 %v538
    %v625 = vunpack.c.h.b16 %v538
    %v626 = vunpack.c.l.b16 %v539
    %v627 = vunpack.c.h.b16 %v539
    %v628 = vunpack.c.l.b16 %v540
    %v629 = vunpack.c.h.b16 %v540
    %v630 = vunpack.c.l.b16 %v541
    %v631 = vunpack.c.h.b16 %v541
    %v632 = vunpack.c.l.b16 %v542
    %v633 = vunpack.c.h.b16 %v542
    %v634 = vunpack.c.l.b16 %v543
    %v635 = vunpack.c.h.b16 %v543
    %v636 = vunpack.c.l.b16 %v544
    %v637 = vunpack.c.h.b16 %v544
    %v638 = vunpack.c.l.b16 %v545
    %v639 = vunpack.c.h.b16 %v545
    %v640 = vunpack.c.l.b16 %v546
    %v641 = vunpack.c.h.b16 %v546
    %v642 = vunpack.c.l.b16 %v547
    %v643 = vunpack.c.h.b16 %v547
    %v644 = vunpack.c.l.b16 %v548
    %v645 = vunpack.c.h.b16 %v548
    %v646 = vunpack.c.l.b16 %v549
    %v647 = vunpack.c.h.b16 %v549
    %v648 = vunpack.c.l.b16 %v550
    %v649 = vunpack.c.h.b16 %v550
    %v650 = vunpack.c.l.b16 %v551
    %v651 = vunpack.c.h.b16 %v551
    %v652 = vunpack.c.l.b16 %v552
    %v653 = vunpack.c.h.b16 %v552
    %v654 = vunpack.c.l.b16 %v553
    %v655 = vunpack.c.h.b16 %v553
    %v656 = vunpack.c.l.b16 %v554
    %v657 = vunpack.c.h.b16 %v554
    %v658 = vunpack.c.l.b16 %v555
    %v659 = vunpack.c.h.b16 %v555
    %v660 = vunpack.c.l.b16 %v556
    %v661 = vunpack.c.h.b16 %v556
    %v662 = vunpack.c.l.b16 %v557
    %v663 = vunpack.c.h.b16 %v557
    %v664 = vunpack.c.l.b16 %v558
    %v665 = vunpack.c.h.b16 %v558
    %v666 = vunpack.c.l.b16 %v559
    %v667 = vunpack.c.h.b16 %v559
    %v668 = vpack.c.b16 %v606, %v604
    %v669 = vpack.c.b16 %v607, %v605
    %v670 = vpack.c.b16 %v610, %v608
    %v671 = vpack.c.b16 %v611, %v609
    %v672 = vpack.c.b16 %v614, %v612
    %v673 = vpack.c.b16 %v615, %v613
    %v674 = vpack.c.b16 %v618, %v616
    %v675 = vpack.c.b16 %v619, %v617
    %v676 = vpack.c.b16 %v622, %v620
    %v677 = vpack.c.b16 %v623, %v621
    %v678 = vpack.c.b16 %v626, %v624
    %v679 = vpack.c.b16 %v627, %v625
    %v680 = vpack.c.b16 %v630, %v628
    %v681 = vpack.c.b16 %v631, %v629
    %v682 = vpack.c.b16 %v634, %v632
    %v683 = vpack.c.b16 %v635, %v633
    %v684 = vpack.c.b16 %v638, %v636
    %v685 = vpack.c.b16 %v639, %v637
    %v686 = vpack.c.b16 %v642, %v640
    %v687 = vpack.c.b16 %v643, %v641
    %v688 = vpack.c.b16 %v646, %v644
    %v689 = vpack.c.b16 %v647, %v645
    %v690 = vpack.c.b16 %v650, %v648
    %v691 = vpack.c.b16 %v651, %v649
    %v692 = vpack.c.b16 %v654, %v652
    %v693 = vpack.c.b16 %v655, %v653
    %v694 = vpack.c.b16 %v658, %v656
    %v695 = vpack.c.b16 %v659, %v657
    %v696 = vpack.c.b16 %v662, %v660
    %v697 = vpack.c.b16 %v663, %v661
    %v698 = vpack.c.b16 %v666, %v664
    %v699 = vpack.c.b16 %v667, %v665
    %732 = vmatprep.subr.bf16.mxu0 %v683
    %733 = vmatpush1.bf16.msra.mxu0 %v682
    %734 = vmatprep.subr.bf16.mxu0 %v681
    %735 = vmatpush1.bf16.msra.mxu0 %v680
    %736 = vmatprep.subr.bf16.mxu0 %v679
    %737 = vmatpush1.bf16.msra.mxu0 %v678
    %738 = vmatprep.subr.bf16.mxu0 %v677
    %739 = vmatpush1.bf16.msra.mxu0 %v676
    %740 = vmatprep.subr.bf16.mxu0 %v675
    %741 = vmatpush1.bf16.msra.mxu0 %v674
    %742 = vmatprep.subr.bf16.mxu0 %v673
    %743 = vmatpush1.bf16.msra.mxu0 %v672
    %744 = vmatprep.subr.bf16.mxu0 %v671
    %745 = vmatpush1.bf16.msra.mxu0 %v670
    %746 = vmatprep.subr.bf16.mxu0 %v669
    %747 = vmatpush1.bf16.msra.mxu0 %v668
    %748 = vmatprep.subr.bf16.mxu0 %v699
    %749 = vmatpush2.bf16.msra.mxu0 %v698
    %750 = vmatprep.subr.bf16.mxu0 %v697
    %751 = vmatpush2.bf16.msra.mxu0 %v696
    %752 = vmatprep.subr.bf16.mxu0 %v695
    %753 = vmatpush2.bf16.msra.mxu0 %v694
    %754 = vmatprep.subr.bf16.mxu0 %v693
    %755 = vmatpush2.bf16.msra.mxu0 %v692
    %756 = vmatprep.subr.bf16.mxu0 %v691
    %757 = vmatpush2.bf16.msra.mxu0 %v690
    %758 = vmatprep.subr.bf16.mxu0 %v689
    %759 = vmatpush2.bf16.msra.mxu0 %v688
    %760 = vmatprep.subr.bf16.mxu0 %v687
    %761 = vmatpush2.bf16.msra.mxu0 %v686
    %762 = vmatprep.subr.bf16.mxu0 %v685
    %763 = vmatpush2.bf16.msra.mxu0 %v684
    %764 = vmatprep.mubr.bf16.mxu0 %v527
    %765 = vmatmul.mubr.bf16.gmra.mxu0 %v526
    %v766 = vpop.f32.mrf.mxu0
    %v767 = vadd.f32 %v565, %v766
    %v768 = vpop.f32.mrf.mxu0
    %v769 = vadd.f32 %v569, %v768
    %v770 = vpop.f32.mrf.mxu0
    %v771 = vadd.f32 %v565, %v770
    %v772 = vpop.f32.mrf.mxu0
    %v773 = vadd.f32 %v569, %v772
    %774 = vdwg.mxu0
    %v775 = vmul.f32 %v767, 0.2
    %v776 = vmul.f32 %v769, 0.2
    %v777 = vmul.f32 %v771, 0.2
    %v778 = vmul.f32 %v773, 0.2
    %v779 = vmax.f32 %v767, %v775
    %v780 = vmax.f32 %v769, %v776
    %v781 = vmax.f32 %v771, %v777
    %v782 = vmax.f32 %v773, %v778
    %v783 = vpack.c.bf16 %v781, %v779
    %v784 = vpack.c.bf16 %v782, %v780
    %v785 = vld [vmem:[#allocation10] sm:$0xf]
    %v786 = vld [vmem:[#allocation10 + $0x4] sm:$0xf]
    %v787 = vld [vmem:[#allocation10 + $0x8] sm:$0xf]
    %v788 = vld [vmem:[#allocation10 + $0xc] sm:$0xf]
    %v789 = vld [vmem:[#allocation10 + $0x10] sm:$0xf]
    %v790 = vld [vmem:[#allocation10 + $0x14] sm:$0xf]
    %v791 = vld [vmem:[#allocation10 + $0x18] sm:$0xf]
    %v792 = vld [vmem:[#allocation10 + $0x1c] sm:$0xf]
    %v793 = vld [vmem:[#allocation10 + $0x20] sm:$0xf]
    %v794 = vld [vmem:[#allocation10 + $0x24] sm:$0xf]
    %v795 = vld [vmem:[#allocation10 + $0x28] sm:$0xf]
    %v796 = vld [vmem:[#allocation10 + $0x2c] sm:$0xf]
    %v797 = vld [vmem:[#allocation10 + $0x30] sm:$0xf]
    %v798 = vld [vmem:[#allocation10 + $0x34] sm:$0xf]
    %v799 = vld [vmem:[#allocation10 + $0x38] sm:$0xf]
    %v800 = vld [vmem:[#allocation10 + $0x3c] sm:$0xf]
    %v801 = vld [vmem:[#allocation10 + $0x40] sm:$0xf]
    %v802 = vld [vmem:[#allocation10 + $0x44] sm:$0xf]
    %v803 = vld [vmem:[#allocation10 + $0x48] sm:$0xf]
    %v804 = vld [vmem:[#allocation10 + $0x4c] sm:$0xf]
    %v805 = vld [vmem:[#allocation10 + $0x50] sm:$0xf]
    %v806 = vld [vmem:[#allocation10 + $0x54] sm:$0xf]
    %v807 = vld [vmem:[#allocation10 + $0x58] sm:$0xf]
    %v808 = vld [vmem:[#allocation10 + $0x5c] sm:$0xf]
    %v809 = vld [vmem:[#allocation10 + $0x60] sm:$0xf]
    %v810 = vld [vmem:[#allocation10 + $0x64] sm:$0xf]
    %v811 = vld [vmem:[#allocation10 + $0x68] sm:$0xf]
    %v812 = vld [vmem:[#allocation10 + $0x6c] sm:$0xf]
    %v813 = vld [vmem:[#allocation10 + $0x70] sm:$0xf]
    %v814 = vld [vmem:[#allocation10 + $0x74] sm:$0xf]
    %v815 = vld [vmem:[#allocation10 + $0x78] sm:$0xf]
    %v816 = vld [vmem:[#allocation10 + $0x7c] sm:$0xf]
    %v817 = vld [vmem:[%s8] sm:$0x1]
    %v819 = vlaneseq
    %v820 = vshrl.u32 %v819, 7
    %v821 = vsub.s32 0, %v820
    %v822 = vrot.slane %v817, %v821
    %v856 = vunpack.c.l.b16 %v785
    %v857 = vunpack.c.l.b16 %v786
    %v858 = vunpack.c.l.b16 %v787
    %v859 = vunpack.c.l.b16 %v788
    %v860 = vunpack.c.l.b16 %v789
    %v861 = vunpack.c.l.b16 %v790
    %v862 = vunpack.c.l.b16 %v791
    %v863 = vunpack.c.l.b16 %v792
    %v864 = vunpack.c.l.b16 %v793
    %v865 = vunpack.c.l.b16 %v794
    %v866 = vunpack.c.l.b16 %v795
    %v867 = vunpack.c.l.b16 %v796
    %v868 = vunpack.c.l.b16 %v797
    %v869 = vunpack.c.l.b16 %v798
    %v870 = vunpack.c.l.b16 %v799
    %v871 = vunpack.c.l.b16 %v800
    %v872 = vunpack.c.l.b16 %v801
    %v873 = vunpack.c.l.b16 %v802
    %v874 = vunpack.c.l.b16 %v803
    %v875 = vunpack.c.l.b16 %v804
    %v876 = vunpack.c.l.b16 %v805
    %v877 = vunpack.c.l.b16 %v806
    %v878 = vunpack.c.l.b16 %v807
    %v879 = vunpack.c.l.b16 %v808
    %v880 = vunpack.c.l.b16 %v809
    %v881 = vunpack.c.l.b16 %v810
    %v882 = vunpack.c.l.b16 %v811
    %v883 = vunpack.c.l.b16 %v812
    %v884 = vunpack.c.l.b16 %v813
    %v885 = vunpack.c.l.b16 %v814
    %v886 = vunpack.c.l.b16 %v815
    %v887 = vunpack.c.l.b16 %v816
    %v888 = vpack.c.b16 %v857, %v856
    %v889 = vpack.c.b16 %v859, %v858
    %v890 = vpack.c.b16 %v861, %v860
    %v891 = vpack.c.b16 %v863, %v862
    %v892 = vpack.c.b16 %v865, %v864
    %v893 = vpack.c.b16 %v867, %v866
    %v894 = vpack.c.b16 %v869, %v868
    %v895 = vpack.c.b16 %v871, %v870
    %v896 = vpack.c.b16 %v873, %v872
    %v897 = vpack.c.b16 %v875, %v874
    %v898 = vpack.c.b16 %v877, %v876
    %v899 = vpack.c.b16 %v879, %v878
    %v900 = vpack.c.b16 %v881, %v880
    %v901 = vpack.c.b16 %v883, %v882
    %v902 = vpack.c.b16 %v885, %v884
    %v903 = vpack.c.b16 %v887, %v886
    %920 = vmatprep.subr.bf16.mxu0 0
    %921 = vmatpush1.bf16.msra.mxu0 %v895
    %922 = vmatprep.subr.bf16.mxu0 0
    %923 = vmatpush1.bf16.msra.mxu0 %v894
    %924 = vmatprep.subr.bf16.mxu0 0
    %925 = vmatpush1.bf16.msra.mxu0 %v893
    %926 = vmatprep.subr.bf16.mxu0 0
    %927 = vmatpush1.bf16.msra.mxu0 %v892
    %928 = vmatprep.subr.bf16.mxu0 0
    %929 = vmatpush1.bf16.msra.mxu0 %v891
    %930 = vmatprep.subr.bf16.mxu0 0
    %931 = vmatpush1.bf16.msra.mxu0 %v890
    %932 = vmatprep.subr.bf16.mxu0 0
    %933 = vmatpush1.bf16.msra.mxu0 %v889
    %934 = vmatprep.subr.bf16.mxu0 0
    %935 = vmatpush1.bf16.msra.mxu0 %v888
    %936 = vmatprep.subr.bf16.mxu0 0
    %937 = vmatpush2.bf16.msra.mxu0 %v903
    %938 = vmatprep.subr.bf16.mxu0 0
    %939 = vmatpush2.bf16.msra.mxu0 %v902
    %940 = vmatprep.subr.bf16.mxu0 0
    %941 = vmatpush2.bf16.msra.mxu0 %v901
    %942 = vmatprep.subr.bf16.mxu0 0
    %943 = vmatpush2.bf16.msra.mxu0 %v900
    %944 = vmatprep.subr.bf16.mxu0 0
    %945 = vmatpush2.bf16.msra.mxu0 %v899
    %946 = vmatprep.subr.bf16.mxu0 0
    %947 = vmatpush2.bf16.msra.mxu0 %v898
    %948 = vmatprep.subr.bf16.mxu0 0
    %949 = vmatpush2.bf16.msra.mxu0 %v897
    %950 = vmatprep.subr.bf16.mxu0 0
    %951 = vmatpush2.bf16.msra.mxu0 %v896
    %952 = vmatprep.mubr.bf16.mxu0 %v784
    %953 = vmatmul.mubr.bf16.gmra.mxu0 %v783
    %v954 = vpop.f32.mrf.mxu0
    %v955 = vadd.f32 %v822, %v954
    %v956 = vpop.f32.mrf.mxu0
    %v957 = vpop.f32.mrf.mxu0
    %v958 = vadd.f32 %v822, %v957
    %v959 = vpop.f32.mrf.mxu0
    %960 = vdwg.mxu0
    %961 = vst [vmem:[#allocation11] sm:$0xff] %v955
    %962 = vst [vmem:[#allocation11 + $0x8] sm:$0xff] %v958
    // Predicated region
    $region58: #{tpu_custom_call.1} parent=1 // pred_check
      _
    $region59: #{tpu_custom_call.1} parent=1 // pred_check_branch
      %964 = sbr.rel (0) target = $region61
    $region60: #{tpu_custom_call.1} parent=1 // pred_region
      %s966 = ssub.s32 256, 256
      %967 = vsyncadd [#allocation4], %s966
      %s968 = sshll.u32 [#allocation11], 4
      %s969 = int_to_ptr.vmem [resolvable:$true] %s968
      %974 = dma.vmem_to_hbm [thread:$0]  %s969, 256, %s9, [#allocation4], 128, 128, 8
    $region61: #{tpu_custom_call.1} parent=1 // pred_fallthru
      _
    // Predicated region
    $region62: #{tpu_custom_call.1} parent=1 // pred_check
      _
    $region63: #{tpu_custom_call.1} parent=1 // pred_check_branch
      %976 = sbr.rel (0) target = $region65
    $region64: #{tpu_custom_call.1} parent=1 // pred_region
      %977 = dma.done [#allocation4], 256
    $region65: #{tpu_custom_call.1} parent=1 // pred_fallthru
      _
    %978 = vsyncpa [#allocation3], 1
    %979 = vsyncpa [#allocation6], 1
    %980 = vsyncpa [#allocation9], 1
    %981 = vsyncpa [#allocation4], 1

</llo_original>
